<compile_context>
chip_gen: v7x
topology: tpu7x:2x2x1
jax: 0.10.0
libtpu: 0.0.40
codegen_flags: <defaults>
</compile_context>

<pallas_src>
import jax
import jax.numpy as jnp
from jax.experimental import pallas as pl
from jax.experimental.pallas import tpu as pltpu


_SMALL_D_MAX = 127     # below one lane width -> use the batch-on-lanes layout
_D_CHUNK = 512         # lane-aligned chunk for the large-D in-register reduce


# ---------------------------------------------------------------------------
# Kernels
# ---------------------------------------------------------------------------

def _linear_kernel_lanes(x_ref, w_ref, b_ref, o_ref):
    """Small-D path.  x_ref: [D, TB] (batch on lanes), w_ref: [D, 1],
    b_ref: [1, 1] SMEM scalar, o_ref: [1, TB] lane-dense output row."""
    x = x_ref[...].astype(jnp.float32)                 # [D, TB]
    w = w_ref[...].astype(jnp.float32)                 # [D, 1] -> broadcast over lanes
    acc = jnp.sum(x * w, axis=0, keepdims=True)        # tiny sublane reduce -> [1, TB]
    o_ref[...] = (acc + b_ref[0, 0]).astype(o_ref.dtype)


def _linear_kernel_rows(x_ref, w_ref, b_ref, o_ref):
    """Large-D path.  x_ref: [TB, D], w_ref: [1, D] (VMEM-resident),
    b_ref: [1, 1] SMEM scalar, o_ref: [TB, 1]."""
    tb, d = x_ref.shape
    acc = jnp.zeros((tb, 1), dtype=jnp.float32)
    start = 0
    while start < d:                                   # static Python loop, static slices
        size = min(_D_CHUNK, d - start)
        xc = x_ref[:, start:start + size].astype(jnp.float32)
        wc = w_ref[:, start:start + size].astype(jnp.float32)
        acc = acc + jnp.sum(xc * wc, axis=-1, keepdims=True)   # stays in vregs
        start += size
    # TODO(synk): for D >= 128 the [TB, 1] column store is <1% of HBM traffic;
    # a lane-dense [1, TB] layout would need an in-kernel transpose of the
    # accumulator and is skipped here for lowering robustness.
    o_ref[...] = (acc + b_ref[0, 0]).astype(o_ref.dtype)


# ---------------------------------------------------------------------------
# Tiling / VMEM budgeting helpers
# ---------------------------------------------------------------------------

def _round_up(v, m):
    return ((v + m - 1) // m) * m


def _vmem_budget():
    """(working-set budget, vmem_limit_bytes) derived from the chip's VMEM."""
    cap = 64 * 1024 * 1024                 # conservative default = v7x physical
    try:
        info = pltpu.get_tpu_info()
        c = getattr(info, "vmem_capacity_bytes", None)
        if c:
            cap = int(c)
    except Exception:
        pass
    budget = cap // 2                      # 32 MiB on v7x, 64 MiB on v5e/v6e
    vmem_limit = (cap * 3) // 4            # 48 MiB on v7x, 96 MiB on v5e/v6e
    return budget, vmem_limit


def _choose_tb_lanes(B, D, tb, budget):
    """Small-D path: TB is a lane count (multiple of 128 unless full extent)."""
    d_pad = _round_up(max(D, 1), 8)                       # sublane-padded x rows
    per_lane = 4 * (2 * d_pad + 2 * 8)                    # x (x2 bufs) + padded out (x2)
    avail = max(budget - (1 << 20), per_lane * 128)
    tb_cap = max(128, (avail // per_lane) // 128 * 128)
    tb_target = tb if tb is not None else 65536
    tb_target = max(128, min(tb_target, tb_cap))
    tb_target = (tb_target // 128) * 128
    if B >= 256:
        # >= 2 grid steps so both v7x TensorCores get work (neutral on v5e/v6e).
        tb_target = min(tb_target, max(128, _round_up(pl.cdiv(B, 2), 128)))
    if B <= tb_target:
        return B                                          # full extent (always legal)
    return tb_target


def _choose_tb_rows(B, D, tb, budget):
    """Large-D path: TB is a row count (multiple of 8 unless full extent)."""
    d_pad = _round_up(D, 128)                             # lane-padded row length
    w_bytes = 2 * 8 * d_pad * 4                           # resident weight block (padded)
    per_row = 4 * (2 * d_pad + 2 * 128 + d_pad)           # x (x2) + padded out (x2) + temp
    avail = max(budget - w_bytes - (1 << 20), per_row * 8)
    tb_cap = max(8, (avail // per_row) // 8 * 8)
    tb_target = tb if tb is not None else 2048
    tb_target = max(8, min(tb_target, tb_cap))
    tb_target = (tb_target // 8) * 8
    if B >= 128:
        # >= 2 grid steps for v7x megacore.
        tb_target = min(tb_target, _round_up(pl.cdiv(B, 2), 8))
    if B <= tb_target:
        return B
    return tb_target


# ---------------------------------------------------------------------------
# Forward wrappers
# ---------------------------------------------------------------------------

def _forward_small_d(x, weight, b2, B, D, tb, budget, vmem_limit):
    TB = _choose_tb_lanes(B, D, tb, budget)
    x_t = jnp.transpose(x)                   # [D, B]: batch on lanes (cheap, D tiny)
    w_col = weight.reshape(D, 1)              # [D, 1]: broadcasts over lanes
    grid = (pl.cdiv(B, TB),)
    out = pl.pallas_call(
        _linear_kernel_lanes,
        out_shape=jax.ShapeDtypeStruct((1, B), x.dtype),
        grid_spec=pltpu.PrefetchScalarGridSpec(
            num_scalar_prefetch=0,
            grid=grid,
            in_specs=[
                pl.BlockSpec((D, TB), lambda i: (0, i)),     # streamed, pipelined
                pl.BlockSpec((D, 1), lambda i: (0, 0)),      # resident weight column
                pl.BlockSpec(memory_space=pltpu.MemorySpace.SMEM),   # bias scalar
            ],
            out_specs=pl.BlockSpec((1, TB), lambda i: (0, i)),       # lane-dense rows
        ),
        compiler_params=pltpu.CompilerParams(
            dimension_semantics=("parallel",),
            vmem_limit_bytes=vmem_limit,
        ),
    )(x_t, w_col, b2)
    return out.reshape(B, 1)


def _forward_large_d(x, weight, b2, B, D, tb, budget, vmem_limit):
    TB = _choose_tb_rows(B, D, tb, budget)
    grid = (pl.cdiv(B, TB),)
    out = pl.pallas_call(
        _linear_kernel_rows,
        out_shape=jax.ShapeDtypeStruct((B, 1), x.dtype),
        grid_spec=pltpu.PrefetchScalarGridSpec(
            num_scalar_prefetch=0,
            grid=grid,
            in_specs=[
                pl.BlockSpec((TB, D), lambda i: (i, 0)),     # streamed row tiles
                pl.BlockSpec((1, D), lambda i: (0, 0)),      # resident weight row
                pl.BlockSpec(memory_space=pltpu.MemorySpace.SMEM),   # bias scalar
            ],
            out_specs=pl.BlockSpec((TB, 1), lambda i: (i, 0)),
        ),
        compiler_params=pltpu.CompilerParams(
            dimension_semantics=("parallel",),
            vmem_limit_bytes=vmem_limit,
        ),
    )(x, weight, b2)
    return out


def linear_forward(x, weight, bias, *, tb=None):
    """nn.Linear(input_size, 1) forward.  x: [B, D], weight: [1, D] (PyTorch
    layout), bias: [1].  `tb` optionally caps the batch tile (rows for D>=128,
    lanes -- rounded to 128 -- for D<128)."""
    B, D = x.shape
    assert weight.shape == (1, D), "weight must be [1, D] (nn.Linear layout)"
    budget, vmem_limit = _vmem_budget()
    b2 = jnp.asarray(bias, dtype=jnp.float32).reshape(1, 1)
    if D <= _SMALL_D_MAX:
        return _forward_small_d(x, weight, b2, B, D, tb, budget, vmem_limit)
    return _forward_large_d(x, weight, b2, B, D, tb, budget, vmem_limit)


# ---------------------------------------------------------------------------
# Self-test
# ---------------------------------------------------------------------------

if __name__ == "__main__":
    key = jax.random.PRNGKey(0)
    kx1, kw1, kb1, kx2, kw2, kb2 = jax.random.split(key, 6)

    # --- Case 1: the course model (input_size = 2) -> small-D, batch-on-lanes path.
    B1, D1 = 512, 2
    bound1 = 1.0 / (D1 ** 0.5)
    x1 = jax.random.normal(kx1, (B1, D1), dtype=jnp.float32)
    w1 = jax.random.uniform(kw1, (1, D1), minval=-bound1, maxval=bound1, dtype=jnp.float32)
    b1 = jax.random.uniform(kb1, (1,), minval=-bound1, maxval=bound1, dtype=jnp.float32)

    y1_tiled = linear_forward(x1, w1, b1, tb=128)   # multi-tile path (grid = 4)
    y1_auto = linear_forward(x1, w1, b1)            # auto tiling (>= 2 grid steps)
    jax.block_until_ready(y1_tiled)
    jax.block_until_ready(y1_auto)

    ref1 = jnp.sum(x1 * w1, axis=-1, keepdims=True) + b1
    assert y1_tiled.shape == (B1, 1)
    assert jnp.allclose(y1_tiled, ref1, atol=1e-5), "small-D tiled mismatch"
    assert jnp.allclose(y1_auto, ref1, atol=1e-5), "small-D auto mismatch"

    # --- Case 2: wide-feature input -> large-D, streamed row-tile path.
    B2, D2 = 128, 256
    bound2 = 1.0 / (D2 ** 0.5)
    x2 = jax.random.normal(kx2, (B2, D2), dtype=jnp.float32)
    w2 = jax.random.uniform(kw2, (1, D2), minval=-bound2, maxval=bound2, dtype=jnp.float32)
    b2 = jax.random.uniform(kb2, (1,), minval=-bound2, maxval=bound2, dtype=jnp.float32)

    y2_tiled = linear_forward(x2, w2, b2, tb=32)    # multi-tile path (grid = 4)
    y2_auto = linear_forward(x2, w2, b2)            # auto tiling (grid = 2)
    jax.block_until_ready(y2_tiled)
    jax.block_until_ready(y2_auto)

    ref2 = jnp.sum(x2 * w2, axis=-1, keepdims=True) + b2
    assert y2_tiled.shape == (B2, 1)
    assert jnp.allclose(y2_tiled, ref2, atol=1e-4), "large-D tiled mismatch"
    assert jnp.allclose(y2_auto, ref2, atol=1e-4), "large-D auto mismatch"

    print("KERNEL_OK")
</pallas_src>

<mosaic_0001>
module attributes {stable_mosaic.version = 11 : i64} {
  func.func @_linear_kernel_lanes(%arg0: i32, %arg1: memref<2x128xf32, #tpu.memory_space<vmem>>, %arg2: memref<2x1xf32, #tpu.memory_space<vmem>>, %arg3: memref<1x1xf32, #tpu.memory_space<smem>>, %arg4: memref<1x128xf32, #tpu.memory_space<vmem>>) attributes {dimension_semantics = [#tpu.dimension_semantics<parallel>], iteration_bounds = array<i64: 4>, scalar_prefetch = 0 : i64, scratch_operands = 0 : i64, tpu.core_type = #tpu.core_type<tc>, window_params = [{transform_indices = @transform_0, window_bounds = array<i64: 2, 128>}, {pipeline_mode = #tpu.pipeline_mode<synchronous>, transform_indices = @transform_1, window_bounds = array<i64: 2, 1>}, {transform_indices = @transform_2, window_bounds = array<i64: 1, 1>}, {transform_indices = @transform_3, window_bounds = array<i64: 1, 128>}]} {
    %c0 = arith.constant 0 : index
    %c0_0 = arith.constant 0 : index
    %0 = vector.load %arg1[%c0, %c0_0] : memref<2x128xf32, #tpu.memory_space<vmem>>, vector<2x128xf32>
    %c0_1 = arith.constant 0 : index
    %c0_2 = arith.constant 0 : index
    %1 = vector.load %arg2[%c0_1, %c0_2] : memref<2x1xf32, #tpu.memory_space<vmem>>, vector<2x1xf32>
    %2 = vector.broadcast %1 : vector<2x1xf32> to vector<2x128xf32>
    %3 = arith.mulf %0, %2 : vector<2x128xf32>
    %cst = arith.constant dense<0.000000e+00> : vector<128xf32>
    %4 = vector.multi_reduction <add>, %3, %cst [0] : vector<2x128xf32> to vector<128xf32>
    %5 = vector.shape_cast %4 : vector<128xf32> to vector<1x128xf32>
    %c0_3 = arith.constant 0 : index
    %c0_4 = arith.constant 0 : index
    %6 = memref.load %arg3[%c0_3, %c0_4] : memref<1x1xf32, #tpu.memory_space<smem>>
    %7 = vector.broadcast %6 : f32 to vector<1x128xf32>
    %8 = arith.addf %5, %7 : vector<1x128xf32>
    %c0_5 = arith.constant 0 : index
    %c0_6 = arith.constant 0 : index
    %9 = vector.load %arg4[%c0_5, %c0_6] : memref<1x128xf32, #tpu.memory_space<vmem>>, vector<1x128xf32>
    tpu.vector_store %arg4[%c0_5, %c0_6], %8 {strides = array<i32>} : memref<1x128xf32, #tpu.memory_space<vmem>>, vector<1x128xf32>,
    return
  }
  func.func @transform_0(%arg0: i32) -> (i32, i32) {
    %c0_i32 = arith.constant 0 : i32
    %c0_i32_0 = arith.constant 0 : i32
    return %c0_i32, %arg0 : i32, i32
  }
  func.func @transform_1(%arg0: i32) -> (i32, i32) {
    %c0_i32 = arith.constant 0 : i32
    %c0_i32_0 = arith.constant 0 : i32
    %c0_i32_1 = arith.constant 0 : i32
    return %c0_i32, %c0_i32_0 : i32, i32
  }
  func.func @transform_2(%arg0: i32) -> (i32, i32) {
    %c0_i32 = arith.constant 0 : i32
    %c0_i32_0 = arith.constant 0 : i32
    %c0_i32_1 = arith.constant 0 : i32
    return %c0_i32, %c0_i32_0 : i32, i32
  }
  func.func @transform_3(%arg0: i32) -> (i32, i32) {
    %c0_i32 = arith.constant 0 : i32
    %c0_i32_0 = arith.constant 0 : i32
    return %c0_i32, %arg0 : i32, i32
  }
}

</mosaic_0001>

<llo_original>
// kernel: tpu_custom_call.1
$region0: #{tpu_custom_call.1}
  #allocation0 [shape = 'u32[]', space=smem, size = 0x4, offset = 0x4, fixed_abs, tag = 'smem constant byte address 0x4 - core index']
  #allocation1 [shape = 'u32[144,128]{1,0:T(1,128)}', space=vmem, size = 0x12000, scoped, tag = 'internal scratch']
  #allocation2 [shape = 'f32[1,1]{1,0:T(1,128)S(6)}', space=smem, size = 0x200, scoped, tag = 'scoped memory for tpu_custom_call.1']
  %s0 = inlined_call_operand.hbm [shape: f32[2,512], index: 0, kind: input, shape index: {}]
  %s1 = inlined_call_operand.vmem [shape: f32[2,1], index: 1, kind: input, shape index: {}]
  %s2 = inlined_call_operand.<no memory space> [shape: f32[1,1], index: 2, kind: input, shape index: {}]
  %s3 = inlined_call_operand.hbm [shape: f32[1,512], index: 3, kind: output, shape index: {}]
  %s4 = sld [smem:[#allocation0]]
  $region49: #{tpu_custom_call.1} parent=0
    _
  %s6 = ssub.s32 1, %s4
  %s7 = scalar_select 0, %s6, %s4
  %8 = sst [smem:[#allocation2]] %s2
  $region1: #{tpu_custom_call.1} parent=0
    #allocation3 [shape = 'u8[2048]{0}', space=vmem, size = 0x800, scoped, tag = 'input window, operand 0']
    #allocation4 [shape = 's32[2]{0}', space=sflag, size = 0x8, scoped, tag = 'scoped memory for tpu_custom_call.1']
    #allocation5 [shape = 's32[2]{0}', space=sflag, size = 0x8, scoped, tag = 'scoped memory for tpu_custom_call.1']
    #allocation6 [shape = 'u8[1024]{0}', space=vmem, size = 0x400, scoped, tag = 'output window, operand 0']
    %9 = vsyncpa [#allocation4], 0
    %s10 = scalar_lea.sflag [#allocation4], 1
    %11 = vsyncpa %s10, 0
    %12 = vsyncpa [#allocation5], 0
    %s13 = scalar_lea.sflag [#allocation5], 1
    %14 = vsyncpa %s13, 0
    loop: start=0, step=1, limit=6
    $region2: #{tpu_custom_call.1} parent=1 // loop_pre_header
      _
    $region3: #{tpu_custom_call.1} parent=1 // loop_header
      %s16 = sphi 0, %s20
      %p17 = scmp.ge.s32.totalorder %s16, 6
      %s26 = sphi 0, %s28
      %s29 = sphi 0, %s26
      %s30 = sphi 0, %s29
      %s46 = sphi 0, %s30
      %s50 = sphi 0, %s50
      %s52 = sphi 0, %s50
      %s53 = sphi 0, %s52
      %s67 = sphi 0, %s53
      %s71 = sphi 0, %s71
      %s73 = sphi 0, %s71
      %s74 = sphi 0, %s73
      %s88 = sphi 0, %s74
      %s94 = sphi 0, %s96
      %s97 = sphi 0, %s94
      %s98 = sphi 0, %s97
      %s114 = sphi 0, %s98
    $region4: #{tpu_custom_call.1} parent=1 // loop_header_branch
      %19 = sbr.rel (%p17) target = $region8
    $region5: #{tpu_custom_call.1} parent=1 // loop_body
      %s21 = ssub.s32 %s16, 1
      %s22 = ssub.s32 %s16, 2
      %s23 = sadd.s32 %s16, 1
      %s24 = ssub.s32 %s16, %s23
      %p25 = scmp.eq.s32.totalorder %s24, 0
      %s27 = sadd.s32 %s26, 1
      %s28 = scalar_select %p25, %s26, %s27
      %p31 = pneg %p25
      %p32 = scmp.eq.s32.totalorder %s16, 3
      %p33 = por %p31, %p32
      %p34 = scmp.ne.s32.totalorder %s26, %s29
      %p35 = scmp.eq.s32.totalorder %s16, 0
      %p36 = por %p34, %p35
      %p37 = scmp.ne.s32.totalorder %s26, %s29
      %p38 = scmp.eq.s32.totalorder %s21, 3
      %p39 = por %p37, %p38
      %p40 = scmp.ne.s32.totalorder %s29, %s30
      %p41 = scmp.eq.s32.totalorder %s21, 0
      %p42 = por %p40, %p41
      %p43 = scmp.ne.s32.totalorder %s29, %s30
      %p44 = scmp.eq.s32.totalorder %s22, 3
      %p45 = por %p43, %p44
      %p47 = scmp.ne.s32.totalorder %s30, %s46
      %p48 = scmp.eq.s32.totalorder %s22, 0
      %p49 = por %p47, %p48
      %s51 = sadd.s32 %s50, 1
      %p54 = scmp.eq.s32.totalorder %s16, 3
      %p55 = scmp.ne.s32.totalorder %s50, %s52
      %p56 = scmp.eq.s32.totalorder %s16, 0
      %p57 = por %p55, %p56
      %p58 = scmp.ne.s32.totalorder %s50, %s52
      %p59 = scmp.eq.s32.totalorder %s21, 3
      %p60 = por %p58, %p59
      %p61 = scmp.ne.s32.totalorder %s52, %s53
      %p62 = scmp.eq.s32.totalorder %s21, 0
      %p63 = por %p61, %p62
      %p64 = scmp.ne.s32.totalorder %s52, %s53
      %p65 = scmp.eq.s32.totalorder %s22, 3
      %p66 = por %p64, %p65
      %p68 = scmp.ne.s32.totalorder %s53, %s67
      %p69 = scmp.eq.s32.totalorder %s22, 0
      %p70 = por %p68, %p69
      %s72 = sadd.s32 %s71, 1
      %p75 = scmp.eq.s32.totalorder %s16, 3
      %p76 = scmp.ne.s32.totalorder %s71, %s73
      %p77 = scmp.eq.s32.totalorder %s16, 0
      %p78 = por %p76, %p77
      %p79 = scmp.ne.s32.totalorder %s71, %s73
      %p80 = scmp.eq.s32.totalorder %s21, 3
      %p81 = por %p79, %p80
      %p82 = scmp.ne.s32.totalorder %s73, %s74
      %p83 = scmp.eq.s32.totalorder %s21, 0
      %p84 = por %p82, %p83
      %p85 = scmp.ne.s32.totalorder %s73, %s74
      %p86 = scmp.eq.s32.totalorder %s22, 3
      %p87 = por %p85, %p86
      %p89 = scmp.ne.s32.totalorder %s74, %s88
      %p90 = scmp.eq.s32.totalorder %s22, 0
      %p91 = por %p89, %p90
      %s92 = ssub.s32 %s16, %s23
      %p93 = scmp.eq.s32.totalorder %s92, 0
      %s95 = sadd.s32 %s94, 1
      %s96 = scalar_select %p93, %s94, %s95
      %p99 = pneg %p93
      %p100 = scmp.eq.s32.totalorder %s16, 3
      %p101 = por %p99, %p100
      %p102 = scmp.ne.s32.totalorder %s94, %s97
      %p103 = scmp.eq.s32.totalorder %s16, 0
      %p104 = por %p102, %p103
      %p105 = scmp.ne.s32.totalorder %s94, %s97
      %p106 = scmp.eq.s32.totalorder %s21, 3
      %p107 = por %p105, %p106
      %p108 = scmp.ne.s32.totalorder %s97, %s98
      %p109 = scmp.eq.s32.totalorder %s21, 0
      %p110 = por %p108, %p109
      %p111 = scmp.ne.s32.totalorder %s97, %s98
      %p112 = scmp.eq.s32.totalorder %s22, 3
      %p113 = por %p111, %p112
      %p115 = scmp.ne.s32.totalorder %s98, %s114
      %p116 = scmp.eq.s32.totalorder %s22, 0
      %p117 = por %p115, %p116
      %p118 = scmp.le.s32.totalorder 1, %s16
      %p119 = scmp.lt.s32.totalorder %s16, 5
      %p120 = pnand %p118, %p119
      %p121 = pneg %p120
      // Predicated region
      $region9: #{tpu_custom_call.1} parent=5 // pred_check
        _
      $region10: #{tpu_custom_call.1} parent=5 // pred_check_branch
        %123 = sbr.rel (%p120) target = $region12
      $region11: #{tpu_custom_call.1} parent=5 // pred_region
        %s124 = ssub.s32 %s16, 1
        // Predicated region
        $region13: #{tpu_custom_call.1} parent=11 // pred_check
          %p125 = pneg %p63
        $region14: #{tpu_custom_call.1} parent=11 // pred_check_branch
          %127 = sbr.rel (%p125) target = $region16
        $region15: #{tpu_custom_call.1} parent=11 // pred_region
          _
        $region16: #{tpu_custom_call.1} parent=11 // pred_fallthru
          _
        // Predicated region
        $region17: #{tpu_custom_call.1} parent=11 // pred_check
          %p128 = pneg %p84
        $region18: #{tpu_custom_call.1} parent=11 // pred_check_branch
          %130 = sbr.rel (%p128) target = $region20
        $region19: #{tpu_custom_call.1} parent=11 // pred_region
          _
        $region20: #{tpu_custom_call.1} parent=11 // pred_fallthru
          _
      $region12: #{tpu_custom_call.1} parent=5 // pred_fallthru
        _
      %p131 = scmp.lt.s32.totalorder %s16, 4
      // Predicated region
      $region21: #{tpu_custom_call.1} parent=5 // pred_check
        %p132 = pneg %p131
      $region22: #{tpu_custom_call.1} parent=5 // pred_check_branch
        %134 = sbr.rel (%p132) target = $region24
      $region23: #{tpu_custom_call.1} parent=5 // pred_region
        // Predicated region
        $region25: #{tpu_custom_call.1} parent=23 // pred_check
          %p135 = pneg %p36
        $region26: #{tpu_custom_call.1} parent=23 // pred_check_branch
          %137 = sbr.rel (%p135) target = $region28
        $region27: #{tpu_custom_call.1} parent=23 // pred_region
          %s138 = sand.u32 %s26, 1
          %s139 = scalar_lea.sflag [#allocation4], %s138
          %s140 = sand.u32 %s26, 1
          %s141 = smul.addr %s140, 2
          %s142 = scalar_lea.vmem [#allocation3], %s141
          %s144 = ssub.s32 32, 32
          %145 = vsyncadd %s139, %s144
          %s146 = smul.addr %s16, 32
          %s147 = scalar_lea.hbm %s0, %s146
          %s149 = sshll.u32 %s142, 4
          %s150 = int_to_ptr.vmem [resolvable:$true] %s149
          %152 = dma.hbm_to_vmem [thread:$0]  %s147, 32, %s150, %s139
        $region28: #{tpu_custom_call.1} parent=23 // pred_fallthru
          _
      $region24: #{tpu_custom_call.1} parent=5 // pred_fallthru
        _
      %p153 = scmp.le.s32.totalorder 1, %s16
      %p154 = scmp.lt.s32.totalorder %s16, 5
      %p155 = pnand %p153, %p154
      %p156 = pneg %p155
      // Predicated region
      $region29: #{tpu_custom_call.1} parent=5 // pred_check
        _
      $region30: #{tpu_custom_call.1} parent=5 // pred_check_branch
        %158 = sbr.rel (%p155) target = $region32
      $region31: #{tpu_custom_call.1} parent=5 // pred_region
        %s159 = ssub.s32 %s16, 1
        %s160 = sand.u32 %s29, 1
        %s161 = scalar_lea.sflag [#allocation4], %s160
        %s162 = sand.u32 %s29, 1
        %s163 = smul.addr %s162, 2
        %s164 = scalar_lea.vmem [#allocation3], %s163
        // Predicated region
        $region33: #{tpu_custom_call.1} parent=31 // pred_check
          %p165 = pneg %p42
        $region34: #{tpu_custom_call.1} parent=31 // pred_check_branch
          %167 = sbr.rel (%p165) target = $region36
        $region35: #{tpu_custom_call.1} parent=31 // pred_region
          %168 = dma.done %s161, 32
        $region36: #{tpu_custom_call.1} parent=31 // pred_fallthru
          _
        %s169 = sand.u32 %s29, 1
        %s170 = scalar_lea.sflag [#allocation4], %s169
        %s171 = sand.u32 %s29, 1
        %s172 = smul.addr %s171, 2
        %s173 = scalar_lea.vmem [#allocation3], %s172
        %p174 = pneg %p42
        %p175 = pneg %p39
        %p176 = pneg %p63
        %p177 = pneg %p60
        %p178 = pneg %p84
        %p179 = pneg %p81
        %p180 = pneg %p110
        %p181 = pneg %p107
        %s182 = sand.u32 %s97, 1
        %s183 = scalar_lea.sflag [#allocation5], %s182
        %s184 = sand.u32 %s97, 1
        %s185 = scalar_lea.vmem [#allocation6], %s184
        %v186 = vld [vmem:[%s164] sm:$0x3]
        %v187 = vld [vmem:[%s1] sm:$0x3]
        %189 = vset.pattern.permute.xlu0 0
        %190 = vperm.xlu0 %189, %v187
        %v191 = vpop.permute.xlu0 %190
        %v193 = vmul.f32 %v186, %v191
        %vm194 = vcmask 1041408
        %v195 = vsel %vm194, %v193, 0.0
        %v196 = vrot.slane %v195, 4
        %v197 = vadd.f32 %v195, %v196
        %v198 = vrot.slane %v197, 2
        %v199 = vadd.f32 %v197, %v198
        %v200 = vrot.slane %v199, 1
        %v201 = vadd.f32 %v199, %v200
        %s202 = sld [smem:[#allocation2]]
        %v203 = vstv %s202
        %v204 = vadd.f32 %v201, %v203
        %205 = vst [vmem:[%s185] sm:$0x1] %v204
        %s206 = sand.u32 %s97, 1
        %s207 = scalar_lea.sflag [#allocation5], %s206
        %s208 = sand.u32 %s97, 1
        %s209 = scalar_lea.vmem [#allocation6], %s208
        // Predicated region
        $region37: #{tpu_custom_call.1} parent=31 // pred_check
          %p210 = pneg %p107
        $region38: #{tpu_custom_call.1} parent=31 // pred_check_branch
          %212 = sbr.rel (%p210) target = $region40
        $region39: #{tpu_custom_call.1} parent=31 // pred_region
          %s214 = ssub.s32 16, 16
          %215 = vsyncadd %s207, %s214
          %s216 = smul.addr %s21, 16
          %s217 = scalar_lea.hbm %s3, %s216
          %s219 = sshll.u32 %s209, 4
          %s220 = int_to_ptr.vmem [resolvable:$true] %s219
          %222 = dma.vmem_to_hbm [thread:$0]  %s220, 16, %s217, %s207
        $region40: #{tpu_custom_call.1} parent=31 // pred_fallthru
          _
      $region32: #{tpu_custom_call.1} parent=5 // pred_fallthru
        _
      %p223 = scmp.le.s32.totalorder 2, %s16
      // Predicated region
      $region41: #{tpu_custom_call.1} parent=5 // pred_check
        %p224 = pneg %p223
      $region42: #{tpu_custom_call.1} parent=5 // pred_check_branch
        %226 = sbr.rel (%p224) target = $region44
      $region43: #{tpu_custom_call.1} parent=5 // pred_region
        %s227 = ssub.s32 %s16, 2
        // Predicated region
        $region45: #{tpu_custom_call.1} parent=43 // pred_check
          %p228 = pneg %p113
        $region46: #{tpu_custom_call.1} parent=43 // pred_check_branch
          %230 = sbr.rel (%p228) target = $region48
        $region47: #{tpu_custom_call.1} parent=43 // pred_region
          %s231 = sand.u32 %s98, 1
          %s232 = scalar_lea.sflag [#allocation5], %s231
          %s233 = sand.u32 %s98, 1
          %s234 = scalar_lea.vmem [#allocation6], %s233
          %235 = dma.done %s232, 16
        $region48: #{tpu_custom_call.1} parent=43 // pred_fallthru
          _
      $region44: #{tpu_custom_call.1} parent=5 // pred_fallthru
        _
    $region6: #{tpu_custom_call.1} parent=1 // loop_footer
      %s20 = sadd.s32 1, %s16
    $region7: #{tpu_custom_call.1} parent=1 // loop_footer_branch
      %15 = sbr.rel target = $region3
    $region8: #{tpu_custom_call.1} parent=1 // loop_exit
      _
    %236 = vsyncpa [#allocation4], 1
    %s237 = scalar_lea.sflag [#allocation4], 1
    %238 = vsyncpa %s237, 1
    %239 = vsyncpa [#allocation5], 1
    %s240 = scalar_lea.sflag [#allocation5], 1
    %241 = vsyncpa %s240, 1

</llo_original>
